<compile_context>
chip_gen: v7x
topology: tpu7x:2x2x1
jax: 0.10.0
libtpu: 0.0.40
codegen_flags: <defaults>
</compile_context>

<pallas_src>
import jax
import jax.numpy as jnp
from jax.experimental import pallas as pl
from jax.experimental.pallas import tpu as pltpu

TEMPERATURE = 1.0


def _round_up(v, m):
    return ((v + m - 1) // m) * m


def _sigmoid(z):
    return 1.0 / (1.0 + jnp.exp(-z))


# ---------------------------------------------------------------------------
# Kernel 1: Attention3D heads on the *pooled* activation (fc -> bn -> relu -> 4 heads)
# ---------------------------------------------------------------------------
def attn_kernel(pooled_ref, fcw_ref, bns_ref, bnb_ref,
                chw_ref, chb_ref, flw_ref, flb_ref,
                spw_ref, spb_ref, knw_ref, knb_ref,
                ca_ref, fa_ref, sa_ref, ka_ref):
    pooled = pooled_ref[...]                                       # (B, C)
    a = jnp.dot(pooled, fcw_ref[...], preferred_element_type=jnp.float32)   # fc (1x1x1 conv, no bias)
    a = a * bns_ref[...] + bnb_ref[...]                            # BatchNorm3d (eval, folded)
    a = jnp.maximum(a, 0.0)                                        # ReLU

    inv_t = 1.0 / TEMPERATURE
    ca = _sigmoid((jnp.dot(a, chw_ref[...], preferred_element_type=jnp.float32) + chb_ref[...]) * inv_t)
    fa = _sigmoid((jnp.dot(a, flw_ref[...], preferred_element_type=jnp.float32) + flb_ref[...]) * inv_t)
    sa = _sigmoid((jnp.dot(a, spw_ref[...], preferred_element_type=jnp.float32) + spb_ref[...]) * inv_t)

    kl = (jnp.dot(a, knw_ref[...], preferred_element_type=jnp.float32) + knb_ref[...]) * inv_t
    kl = kl - jnp.max(kl, axis=-1, keepdims=True)                  # softmax over kernel_num
    e = jnp.exp(kl)
    ka = e / jnp.sum(e, axis=-1, keepdims=True)

    ca_ref[...] = ca.astype(ca_ref.dtype)
    fa_ref[...] = fa.astype(fa_ref.dtype)
    sa_ref[...] = sa.astype(sa_ref.dtype)
    ka_ref[...] = ka.astype(ka_ref.dtype)


# ---------------------------------------------------------------------------
# Kernel 2: tiled dynamic conv: one wide MXU matmul over all candidate kernels,
#           VPU reduction with the kernel attention.
# ---------------------------------------------------------------------------
def fbd_conv_kernel(ka_ref, colsc_ref, fa_ref, p_ref, w_ref, o_ref):
    # ka_ref   : SMEM (B, Kn)          kernel attention (softmax weights)
    # colsc_ref: VMEM (1, 1, CKp)      per-sample column scale = ca[c] * sa[tap]
    # fa_ref   : VMEM (1, 1, Op)       filter attention (padded to 128 lanes)
    # p_ref    : VMEM (1, TN, CKp)     im2col patch tile (bf16, channels-last cols)
    # w_ref    : VMEM (CKp, Kn*Op)     static candidate weight bank (bf16)
    # o_ref    : VMEM (1, TN, Op)
    b = pl.program_id(0)
    kn = ka_ref.shape[1]
    op = o_ref.shape[-1]

    # channel + spatial attention folded into a per-sample column scale (f32 VPU)
    p = p_ref[0].astype(jnp.float32) * colsc_ref[0]                   # (TN, CKp)

    # one wide matmul against all Kn candidate kernels at once (bf16 MXU, f32 acc)
    acc = jnp.dot(p.astype(w_ref.dtype), w_ref[...],
                  preferred_element_type=jnp.float32)                 # (TN, Kn*Op)

    # reduce over candidate kernels with the kernel attention (scalar * vector, VPU)
    out = ka_ref[b, 0] * acc[:, 0:op]
    for n in range(1, kn):
        out = out + ka_ref[b, n] * acc[:, n * op:(n + 1) * op]

    o_ref[0] = (out * fa_ref[0]).astype(o_ref.dtype)                  # filter attention


# ---------------------------------------------------------------------------
# Parameter init (matches the PyTorch module's _initialize_weights / _init_weights)
# ---------------------------------------------------------------------------
def init_params(key, in_planes, out_planes, kernel_size, kernel_num,
                reduction=0.0625, min_channel=16):
    a_ch = max(int(in_planes * reduction), min_channel)
    k3 = kernel_size ** 3
    ks = jax.random.split(key, 6)

    def kaiming(k, shape, fan_out):  # kaiming_normal_(mode='fan_out', nonlinearity='relu')
        return jax.random.normal(k, shape, jnp.float32) * jnp.sqrt(2.0 / fan_out)

    # 1x1x1 conv weights stored transposed as (in, out) matmul matrices.
    fc_w = kaiming(ks[0], (a_ch, in_planes), a_ch).T             # (C, A)
    ch_w = kaiming(ks[1], (in_planes, a_ch), in_planes).T        # (A, C)
    fl_w = kaiming(ks[2], (out_planes, a_ch), out_planes).T      # (A, O)
    sp_w = kaiming(ks[3], (k3, a_ch), k3).T                      # (A, k^3)
    kn_w = kaiming(ks[4], (kernel_num, a_ch), kernel_num).T      # (A, Kn)
    weight = kaiming(ks[5],
                     (kernel_num, out_planes, in_planes,
                      kernel_size, kernel_size, kernel_size),
                     out_planes * k3)

    eps = 1e-5
    return dict(
        fc_w=fc_w,
        bn_scale=jnp.full((1, a_ch), 1.0 / jnp.sqrt(1.0 + eps), jnp.float32),
        bn_bias=jnp.zeros((1, a_ch), jnp.float32),
        ch_w=ch_w, ch_b=jnp.zeros((1, in_planes), jnp.float32),
        fl_w=fl_w, fl_b=jnp.zeros((1, out_planes), jnp.float32),
        sp_w=sp_w, sp_b=jnp.zeros((1, k3), jnp.float32),
        kn_w=kn_w, kn_b=jnp.zeros((1, kernel_num), jnp.float32),
        weight=weight,
    )


# ---------------------------------------------------------------------------
# One-time reorg of the candidate-weight bank (precompute outside the per-call path)
# ---------------------------------------------------------------------------
def precompute_weight_bank(weight, *, matmul_dtype=jnp.bfloat16):
    kn, o_planes, c, k, _, _ = weight.shape
    k3 = k ** 3
    ck = c * k3
    ckp = _round_up(ck, 128)
    op = _round_up(o_planes, 128)
    # column order of the bank must match the im2col column order: tap*C + c
    wb = jnp.transpose(weight, (3, 4, 5, 2, 0, 1)).reshape(ck, kn, o_planes)
    wb = jnp.pad(wb, ((0, ckp - ck), (0, 0), (0, op - o_planes)))
    return wb.reshape(ckp, kn * op).astype(matmul_dtype)


# ---------------------------------------------------------------------------
# Wrapper: FBDConv3d.forward
# ---------------------------------------------------------------------------
def fbd_conv3d(x, params, *, out_planes, kernel_size, stride=1, padding=1,
               dilation=1, groups=1, kernel_num=4, w_bank=None,
               matmul_dtype=jnp.bfloat16, tile_n=512):
    assert groups == 1, "TODO(synk): groups > 1 not implemented"
    B, C, D, H, W = x.shape
    k = kernel_size
    k3 = k ** 3
    O = out_planes
    Do = (D + 2 * padding - dilation * (k - 1) - 1) // stride + 1
    Ho = (H + 2 * padding - dilation * (k - 1) - 1) // stride + 1
    Wo = (W + 2 * padding - dilation * (k - 1) - 1) // stride + 1
    N = Do * Ho * Wo
    CK = C * k3
    CKp = _round_up(CK, 128)     # lane-aligned contraction dim
    Op = _round_up(O, 128)       # lane-dense output stores (unmasked vst)
    KnOp = kernel_num * Op

    # ---- attention heads: pool in the wrapper, tiny matmuls in a Pallas kernel ----
    pooled = x.mean(axis=(2, 3, 4))                              # AdaptiveAvgPool3d(1) -> (B, C)
    ca, fa, sa, ka = pl.pallas_call(
        attn_kernel,
        out_shape=(jax.ShapeDtypeStruct((B, C), jnp.float32),
                   jax.ShapeDtypeStruct((B, O), jnp.float32),
                   jax.ShapeDtypeStruct((B, k3), jnp.float32),
                   jax.ShapeDtypeStruct((B, kernel_num), jnp.float32)),
    )(pooled, params['fc_w'], params['bn_scale'], params['bn_bias'],
      params['ch_w'], params['ch_b'], params['fl_w'], params['fl_b'],
      params['sp_w'], params['sp_b'], params['kn_w'], params['kn_b'])

    # ---- im2col, built directly channels-last: column index = tap*C + c ----
    # TODO(synk): fuse im2col into the conv kernel to avoid the k^3 HBM blow-up.
    x_cl = jnp.transpose(x, (0, 2, 3, 4, 1))                     # (B, D, H, W, C)
    xp = jnp.pad(x_cl, ((0, 0), (padding, padding), (padding, padding),
                        (padding, padding), (0, 0)))
    cols = []
    for kd in range(k):
        for kh in range(k):
            for kw in range(k):
                d0, h0, w0 = kd * dilation, kh * dilation, kw * dilation
                cols.append(xp[:,
                               d0:d0 + (Do - 1) * stride + 1:stride,
                               h0:h0 + (Ho - 1) * stride + 1:stride,
                               w0:w0 + (Wo - 1) * stride + 1:stride, :])
    patches = jnp.stack(cols, axis=4).reshape(B, N, CK)          # (B, N, CK)

    # N tiling (TN ~ 512 rows, multiple of 8); pad N so the grid divides evenly.
    TN = min(tile_n, _round_up(N, 8))
    Np = _round_up(N, TN)
    NT = Np // TN

    patches = jnp.pad(patches, ((0, 0), (0, Np - N), (0, CKp - CK)))
    patches = patches.astype(matmul_dtype)

    if w_bank is None:
        w_bank = precompute_weight_bank(params['weight'], matmul_dtype=matmul_dtype)

    # channel + spatial attention folded into one per-sample column scale
    col_scale = (sa[:, :, None] * ca[:, None, :]).reshape(B, CK)      # tap*C + c order
    col_scale = jnp.pad(col_scale, ((0, 0), (0, CKp - CK))).reshape(B, 1, CKp)
    fa_p = jnp.pad(fa, ((0, 0), (0, Op - O))).reshape(B, 1, Op)

    cost = pl.CostEstimate(
        flops=2 * B * Np * CKp * KnOp,
        transcendentals=0,
        bytes_accessed=(B * Np * CKp * patches.dtype.itemsize
                        + CKp * KnOp * w_bank.dtype.itemsize
                        + B * Np * Op * 4))

    out_flat = pl.pallas_call(
        fbd_conv_kernel,
        out_shape=jax.ShapeDtypeStruct((B, Np, Op), jnp.float32),
        grid=(B, NT),
        in_specs=[
            pl.BlockSpec(memory_space=pltpu.MemorySpace.SMEM),          # ka (B, Kn)
            pl.BlockSpec((1, 1, CKp), lambda b, n: (b, 0, 0)),          # column scale
            pl.BlockSpec((1, 1, Op), lambda b, n: (b, 0, 0)),           # filter attn
            pl.BlockSpec((1, TN, CKp), lambda b, n: (b, n, 0)),         # patch tile
            pl.BlockSpec((CKp, KnOp), lambda b, n: (0, 0)),             # weight bank (static)
        ],
        out_specs=pl.BlockSpec((1, TN, Op), lambda b, n: (b, n, 0)),
        compiler_params=pltpu.CompilerParams(
            dimension_semantics=("parallel", "parallel"),
            vmem_limit_bytes=32 * 1024 * 1024),
        cost_estimate=cost,
    )(ka, col_scale, fa_p, patches, w_bank)

    out = out_flat[:, :N, :O].reshape(B, Do, Ho, Wo, O).transpose(0, 4, 1, 2, 3)
    return out


# ---------------------------------------------------------------------------
# Pure-JAX reference (same math, independent conv via lax.conv_general_dilated)
# ---------------------------------------------------------------------------
def reference(x, params, *, out_planes, kernel_size, stride, padding, dilation, kernel_num):
    B, C, D, H, W = x.shape
    k = kernel_size
    pooled = x.mean(axis=(2, 3, 4))                                   # (B, C)
    a = pooled @ params['fc_w']
    a = a * params['bn_scale'] + params['bn_bias']
    a = jnp.maximum(a, 0.0)
    t = TEMPERATURE
    ca = _sigmoid((a @ params['ch_w'] + params['ch_b']) / t)          # (B, C)
    fa = _sigmoid((a @ params['fl_w'] + params['fl_b']) / t)          # (B, O)
    sa = _sigmoid((a @ params['sp_w'] + params['sp_b']) / t)          # (B, k^3)
    kl = (a @ params['kn_w'] + params['kn_b']) / t
    ka = jax.nn.softmax(kl, axis=1)                                   # (B, Kn)

    agg = jnp.einsum('bn,nocdef->bocdef', ka, params['weight'])
    agg = agg * sa.reshape(B, 1, 1, k, k, k)                          # (B, O, C, k, k, k)
    xs = x * ca[:, :, None, None, None]

    outs = []
    for b in range(B):
        o = jax.lax.conv_general_dilated(
            xs[b:b + 1], agg[b],
            window_strides=(stride,) * 3,
            padding=[(padding, padding)] * 3,
            rhs_dilation=(dilation,) * 3,
            dimension_numbers=('NCDHW', 'OIDHW', 'NCDHW'))
        outs.append(o)
    out = jnp.concatenate(outs, axis=0)
    return out * fa[:, :, None, None, None]


if __name__ == "__main__":
    B, C_in, C_out = 2, 4, 8
    D = H = W = 8
    cfg = dict(out_planes=C_out, kernel_size=3, stride=1, padding=1,
               dilation=1, kernel_num=4)

    key = jax.random.PRNGKey(0)
    k_params, k_x = jax.random.split(key)
    params = init_params(k_params, C_in, C_out, cfg['kernel_size'], cfg['kernel_num'])
    x = jax.random.normal(k_x, (B, C_in, D, H, W), jnp.float32)

    # weight bank reorg precomputed once outside the per-call path
    w_bank = precompute_weight_bank(params['weight'])

    out = fbd_conv3d(x, params, groups=1, w_bank=w_bank, **cfg)
    out = jax.block_until_ready(out)
    assert out.shape == (B, C_out, D, H, W), out.shape

    ref = reference(x, params, **cfg)
    err = float(jnp.max(jnp.abs(out - ref)))
    # bf16 matmul operands (f32 accumulation) vs f32 reference -> bf16-level tolerance
    tol = 5e-3 + 2e-2 * float(jnp.max(jnp.abs(ref)))
    assert err <= tol, f"mismatch: max abs err {err} > tol {tol}"

    print("KERNEL_OK")
</pallas_src>

<mosaic_0001>
module attributes {stable_mosaic.version = 11 : i64} {
  func.func @attn_kernel(%arg0: memref<2x4xf32, #tpu.memory_space<vmem>>, %arg1: memref<4x16xf32, #tpu.memory_space<vmem>>, %arg2: memref<1x16xf32, #tpu.memory_space<vmem>>, %arg3: memref<1x16xf32, #tpu.memory_space<vmem>>, %arg4: memref<16x4xf32, #tpu.memory_space<vmem>>, %arg5: memref<1x4xf32, #tpu.memory_space<vmem>>, %arg6: memref<16x8xf32, #tpu.memory_space<vmem>>, %arg7: memref<1x8xf32, #tpu.memory_space<vmem>>, %arg8: memref<16x27xf32, #tpu.memory_space<vmem>>, %arg9: memref<1x27xf32, #tpu.memory_space<vmem>>, %arg10: memref<16x4xf32, #tpu.memory_space<vmem>>, %arg11: memref<1x4xf32, #tpu.memory_space<vmem>>, %arg12: memref<2x4xf32, #tpu.memory_space<vmem>>, %arg13: memref<2x8xf32, #tpu.memory_space<vmem>>, %arg14: memref<2x27xf32, #tpu.memory_space<vmem>>, %arg15: memref<2x4xf32, #tpu.memory_space<vmem>>) attributes {dimension_semantics = [], scalar_prefetch = 0 : i64, scratch_operands = 0 : i64, tpu.core_type = #tpu.core_type<tc>} {
    %c0 = arith.constant 0 : index
    %c0_0 = arith.constant 0 : index
    %0 = vector.load %arg0[%c0, %c0_0] : memref<2x4xf32, #tpu.memory_space<vmem>>, vector<2x4xf32>
    %c0_1 = arith.constant 0 : index
    %c0_2 = arith.constant 0 : index
    %1 = vector.load %arg1[%c0_1, %c0_2] : memref<4x16xf32, #tpu.memory_space<vmem>>, vector<4x16xf32>
    %cst = arith.constant dense<0.000000e+00> : vector<2x16xf32>
    %2 = tpu.matmul %0, %1, %cst {dimension_numbers = #tpu.dot_dimension_numbers<[1], [0], [0], [1], [0, 0, 1, 1], [], []>} : vector<2x4xf32>, vector<4x16xf32>, vector<2x16xf32> -> vector<2x16xf32>
    %c0_3 = arith.constant 0 : index
    %c0_4 = arith.constant 0 : index
    %3 = vector.load %arg2[%c0_3, %c0_4] : memref<1x16xf32, #tpu.memory_space<vmem>>, vector<1x16xf32>
    %4 = vector.broadcast %3 : vector<1x16xf32> to vector<2x16xf32>
    %5 = arith.mulf %2, %4 : vector<2x16xf32>
    %c0_5 = arith.constant 0 : index
    %c0_6 = arith.constant 0 : index
    %6 = vector.load %arg3[%c0_5, %c0_6] : memref<1x16xf32, #tpu.memory_space<vmem>>, vector<1x16xf32>
    %7 = vector.broadcast %6 : vector<1x16xf32> to vector<2x16xf32>
    %8 = arith.addf %5, %7 : vector<2x16xf32>
    %cst_7 = arith.constant 0.000000e+00 : f32
    %9 = vector.broadcast %cst_7 : f32 to vector<2x16xf32>
    %10 = arith.maximumf %8, %9 : vector<2x16xf32>
    %c0_8 = arith.constant 0 : index
    %c0_9 = arith.constant 0 : index
    %11 = vector.load %arg4[%c0_8, %c0_9] : memref<16x4xf32, #tpu.memory_space<vmem>>, vector<16x4xf32>
    %cst_10 = arith.constant dense<0.000000e+00> : vector<2x4xf32>
    %12 = tpu.matmul %10, %11, %cst_10 {dimension_numbers = #tpu.dot_dimension_numbers<[1], [0], [0], [1], [0, 0, 1, 1], [], []>} : vector<2x16xf32>, vector<16x4xf32>, vector<2x4xf32> -> vector<2x4xf32>
    %c0_11 = arith.constant 0 : index
    %c0_12 = arith.constant 0 : index
    %13 = vector.load %arg5[%c0_11, %c0_12] : memref<1x4xf32, #tpu.memory_space<vmem>>, vector<1x4xf32>
    %14 = vector.broadcast %13 : vector<1x4xf32> to vector<2x4xf32>
    %15 = arith.addf %12, %14 : vector<2x4xf32>
    %cst_13 = arith.constant 1.000000e+00 : f32
    %16 = vector.broadcast %cst_13 : f32 to vector<2x4xf32>
    %17 = arith.mulf %15, %16 : vector<2x4xf32>
    %cst_14 = arith.constant 0.000000e+00 : f32
    %18 = vector.broadcast %cst_14 : f32 to vector<2x4xf32>
    %19 = arith.subf %18, %17 : vector<2x4xf32>
    %20 = math.exp %19 : vector<2x4xf32>
    %cst_15 = arith.constant 1.000000e+00 : f32
    %21 = vector.broadcast %cst_15 : f32 to vector<2x4xf32>
    %22 = arith.addf %21, %20 : vector<2x4xf32>
    %cst_16 = arith.constant 1.000000e+00 : f32
    %23 = vector.broadcast %cst_16 : f32 to vector<2x4xf32>
    %24 = arith.divf %23, %22 : vector<2x4xf32>
    %c0_17 = arith.constant 0 : index
    %c0_18 = arith.constant 0 : index
    %25 = vector.load %arg6[%c0_17, %c0_18] : memref<16x8xf32, #tpu.memory_space<vmem>>, vector<16x8xf32>
    %cst_19 = arith.constant dense<0.000000e+00> : vector<2x8xf32>
    %26 = tpu.matmul %10, %25, %cst_19 {dimension_numbers = #tpu.dot_dimension_numbers<[1], [0], [0], [1], [0, 0, 1, 1], [], []>} : vector<2x16xf32>, vector<16x8xf32>, vector<2x8xf32> -> vector<2x8xf32>
    %c0_20 = arith.constant 0 : index
    %c0_21 = arith.constant 0 : index
    %27 = vector.load %arg7[%c0_20, %c0_21] : memref<1x8xf32, #tpu.memory_space<vmem>>, vector<1x8xf32>
    %28 = vector.broadcast %27 : vector<1x8xf32> to vector<2x8xf32>
    %29 = arith.addf %26, %28 : vector<2x8xf32>
    %cst_22 = arith.constant 1.000000e+00 : f32
    %30 = vector.broadcast %cst_22 : f32 to vector<2x8xf32>
    %31 = arith.mulf %29, %30 : vector<2x8xf32>
    %cst_23 = arith.constant 0.000000e+00 : f32
    %32 = vector.broadcast %cst_23 : f32 to vector<2x8xf32>
    %33 = arith.subf %32, %31 : vector<2x8xf32>
    %34 = math.exp %33 : vector<2x8xf32>
    %cst_24 = arith.constant 1.000000e+00 : f32
    %35 = vector.broadcast %cst_24 : f32 to vector<2x8xf32>
    %36 = arith.addf %35, %34 : vector<2x8xf32>
    %cst_25 = arith.constant 1.000000e+00 : f32
    %37 = vector.broadcast %cst_25 : f32 to vector<2x8xf32>
    %38 = arith.divf %37, %36 : vector<2x8xf32>
    %c0_26 = arith.constant 0 : index
    %c0_27 = arith.constant 0 : index
    %39 = vector.load %arg8[%c0_26, %c0_27] : memref<16x27xf32, #tpu.memory_space<vmem>>, vector<16x27xf32>
    %cst_28 = arith.constant dense<0.000000e+00> : vector<2x27xf32>
    %40 = tpu.matmul %10, %39, %cst_28 {dimension_numbers = #tpu.dot_dimension_numbers<[1], [0], [0], [1], [0, 0, 1, 1], [], []>} : vector<2x16xf32>, vector<16x27xf32>, vector<2x27xf32> -> vector<2x27xf32>
    %c0_29 = arith.constant 0 : index
    %c0_30 = arith.constant 0 : index
    %41 = vector.load %arg9[%c0_29, %c0_30] : memref<1x27xf32, #tpu.memory_space<vmem>>, vector<1x27xf32>
    %42 = vector.broadcast %41 : vector<1x27xf32> to vector<2x27xf32>
    %43 = arith.addf %40, %42 : vector<2x27xf32>
    %cst_31 = arith.constant 1.000000e+00 : f32
    %44 = vector.broadcast %cst_31 : f32 to vector<2x27xf32>
    %45 = arith.mulf %43, %44 : vector<2x27xf32>
    %cst_32 = arith.constant 0.000000e+00 : f32
    %46 = vector.broadcast %cst_32 : f32 to vector<2x27xf32>
    %47 = arith.subf %46, %45 : vector<2x27xf32>
    %48 = math.exp %47 : vector<2x27xf32>
    %cst_33 = arith.constant 1.000000e+00 : f32
    %49 = vector.broadcast %cst_33 : f32 to vector<2x27xf32>
    %50 = arith.addf %49, %48 : vector<2x27xf32>
    %cst_34 = arith.constant 1.000000e+00 : f32
    %51 = vector.broadcast %cst_34 : f32 to vector<2x27xf32>
    %52 = arith.divf %51, %50 : vector<2x27xf32>
    %c0_35 = arith.constant 0 : index
    %c0_36 = arith.constant 0 : index
    %53 = vector.load %arg10[%c0_35, %c0_36] : memref<16x4xf32, #tpu.memory_space<vmem>>, vector<16x4xf32>
    %cst_37 = arith.constant dense<0.000000e+00> : vector<2x4xf32>
    %54 = tpu.matmul %10, %53, %cst_37 {dimension_numbers = #tpu.dot_dimension_numbers<[1], [0], [0], [1], [0, 0, 1, 1], [], []>} : vector<2x16xf32>, vector<16x4xf32>, vector<2x4xf32> -> vector<2x4xf32>
    %c0_38 = arith.constant 0 : index
    %c0_39 = arith.constant 0 : index
    %55 = vector.load %arg11[%c0_38, %c0_39] : memref<1x4xf32, #tpu.memory_space<vmem>>, vector<1x4xf32>
    %56 = vector.broadcast %55 : vector<1x4xf32> to vector<2x4xf32>
    %57 = arith.addf %54, %56 : vector<2x4xf32>
    %cst_40 = arith.constant 1.000000e+00 : f32
    %58 = vector.broadcast %cst_40 : f32 to vector<2x4xf32>
    %59 = arith.mulf %57, %58 : vector<2x4xf32>
    %cst_41 = arith.constant dense<0xFF800000> : vector<2xf32>
    %60 = vector.multi_reduction <maximumf>, %59, %cst_41 [1] : vector<2x4xf32> to vector<2xf32>
    %61 = vector.shape_cast %60 : vector<2xf32> to vector<2x1xf32>
    %62 = vector.broadcast %61 : vector<2x1xf32> to vector<2x4xf32>
    %63 = arith.subf %59, %62 : vector<2x4xf32>
    %64 = math.exp %63 : vector<2x4xf32>
    %cst_42 = arith.constant dense<0.000000e+00> : vector<2xf32>
    %65 = vector.multi_reduction <add>, %64, %cst_42 [1] : vector<2x4xf32> to vector<2xf32>
    %66 = vector.shape_cast %65 : vector<2xf32> to vector<2x1xf32>
    %67 = vector.broadcast %66 : vector<2x1xf32> to vector<2x4xf32>
    %68 = arith.divf %64, %67 : vector<2x4xf32>
    %c0_43 = arith.constant 0 : index
    %c0_44 = arith.constant 0 : index
    %69 = vector.load %arg12[%c0_43, %c0_44] : memref<2x4xf32, #tpu.memory_space<vmem>>, vector<2x4xf32>
    tpu.vector_store %arg12[%c0_43, %c0_44], %24 {strides = array<i32>} : memref<2x4xf32, #tpu.memory_space<vmem>>, vector<2x4xf32>,
    %c0_45 = arith.constant 0 : index
    %c0_46 = arith.constant 0 : index
    %70 = vector.load %arg13[%c0_45, %c0_46] : memref<2x8xf32, #tpu.memory_space<vmem>>, vector<2x8xf32>
    tpu.vector_store %arg13[%c0_45, %c0_46], %38 {strides = array<i32>} : memref<2x8xf32, #tpu.memory_space<vmem>>, vector<2x8xf32>,
    %c0_47 = arith.constant 0 : index
    %c0_48 = arith.constant 0 : index
    %71 = vector.load %arg14[%c0_47, %c0_48] : memref<2x27xf32, #tpu.memory_space<vmem>>, vector<2x27xf32>
    tpu.vector_store %arg14[%c0_47, %c0_48], %52 {strides = array<i32>} : memref<2x27xf32, #tpu.memory_space<vmem>>, vector<2x27xf32>,
    %c0_49 = arith.constant 0 : index
    %c0_50 = arith.constant 0 : index
    %72 = vector.load %arg15[%c0_49, %c0_50] : memref<2x4xf32, #tpu.memory_space<vmem>>, vector<2x4xf32>
    tpu.vector_store %arg15[%c0_49, %c0_50], %68 {strides = array<i32>} : memref<2x4xf32, #tpu.memory_space<vmem>>, vector<2x4xf32>,
    return
  }
}

</mosaic_0001>

<llo_original>
// kernel: tpu_custom_call.1
$region0: #{tpu_custom_call.1}
  #allocation0 [shape = 'u32[]', space=smem, size = 0x4, offset = 0x4, fixed_abs, tag = 'smem constant byte address 0x4 - core index']
  #allocation1 [shape = 'u32[144,128]{1,0:T(1,128)}', space=vmem, size = 0x12000, scoped, tag = 'internal scratch']
  %s0 = inlined_call_operand.vmem [shape: f32[2,4], index: 0, kind: input, shape index: {}]
  %s1 = inlined_call_operand.vmem [shape: f32[4,16], index: 1, kind: input, shape index: {}]
  %s2 = inlined_call_operand.vmem [shape: f32[1,16], index: 2, kind: input, shape index: {}]
  %s3 = inlined_call_operand.vmem [shape: f32[1,16], index: 3, kind: input, shape index: {}]
  %s4 = inlined_call_operand.vmem [shape: f32[16,4], index: 4, kind: input, shape index: {}]
  %s5 = inlined_call_operand.vmem [shape: f32[1,4], index: 5, kind: input, shape index: {}]
  %s6 = inlined_call_operand.vmem [shape: f32[16,8], index: 6, kind: input, shape index: {}]
  %s7 = inlined_call_operand.vmem [shape: f32[1,8], index: 7, kind: input, shape index: {}]
  %s8 = inlined_call_operand.vmem [shape: f32[16,27], index: 8, kind: input, shape index: {}]
  %s9 = inlined_call_operand.vmem [shape: f32[1,27], index: 9, kind: input, shape index: {}]
  %s10 = inlined_call_operand.vmem [shape: f32[16,4], index: 10, kind: input, shape index: {}]
  %s11 = inlined_call_operand.vmem [shape: f32[1,4], index: 11, kind: input, shape index: {}]
  %s12 = inlined_call_operand.hbm [shape: f32[2,4], index: 12, kind: output, shape index: {0}]
  %s13 = inlined_call_operand.hbm [shape: f32[2,8], index: 13, kind: output, shape index: {1}]
  %s14 = inlined_call_operand.hbm [shape: f32[2,27], index: 14, kind: output, shape index: {2}]
  %s15 = inlined_call_operand.hbm [shape: f32[2,4], index: 15, kind: output, shape index: {3}]
  %16 = xla_tuple %s12, %s13, %s14, %s15
  %s17 = sld [smem:[#allocation0]]
  $region82: #{tpu_custom_call.1} parent=0
    _
  %s19 = ssub.s32 1, %s17
  %s20 = scalar_select 0, %s19, %s17
  $region1: #{tpu_custom_call.1} parent=0
    #allocation2 [shape = 'u8[1024]{0}', space=vmem, size = 0x400, scoped, tag = 'output window, operand 0, single buffered']
    #allocation3 [shape = 's32[1]{0}', space=sflag, size = 0x4, scoped, tag = 'scoped memory for tpu_custom_call.1']
    #allocation4 [shape = 'u8[1024]{0}', space=vmem, size = 0x400, scoped, tag = 'output window, operand 1, single buffered']
    #allocation5 [shape = 's32[1]{0}', space=sflag, size = 0x4, scoped, tag = 'scoped memory for tpu_custom_call.1']
    #allocation6 [shape = 'u8[1024]{0}', space=vmem, size = 0x400, scoped, tag = 'output window, operand 2, single buffered']
    #allocation7 [shape = 'u8[1024]{0}', space=vmem, size = 0x400, scoped, tag = 'output window, operand 3, single buffered']
    #allocation8 [shape = 's32[1]{0}', space=sflag, size = 0x4, scoped, tag = 'scoped memory for tpu_custom_call.1']
    %21 = vsyncpa [#allocation3], 0
    %22 = vsyncpa [#allocation5], 0
    %23 = vsyncpa [#allocation8], 0
    // Predicated region
    $region2: #{tpu_custom_call.1} parent=1 // pred_check
      _
    $region3: #{tpu_custom_call.1} parent=1 // pred_check_branch
      %25 = sbr.rel (0) target = $region5
    $region4: #{tpu_custom_call.1} parent=1 // pred_region
      _
    $region5: #{tpu_custom_call.1} parent=1 // pred_fallthru
      _
    // Predicated region
    $region6: #{tpu_custom_call.1} parent=1 // pred_check
      _
    $region7: #{tpu_custom_call.1} parent=1 // pred_check_branch
      %27 = sbr.rel (0) target = $region9
    $region8: #{tpu_custom_call.1} parent=1 // pred_region
      _
    $region9: #{tpu_custom_call.1} parent=1 // pred_fallthru
      _
    // Predicated region
    $region10: #{tpu_custom_call.1} parent=1 // pred_check
      _
    $region11: #{tpu_custom_call.1} parent=1 // pred_check_branch
      %29 = sbr.rel (0) target = $region13
    $region12: #{tpu_custom_call.1} parent=1 // pred_region
      _
    $region13: #{tpu_custom_call.1} parent=1 // pred_fallthru
      _
    // Predicated region
    $region14: #{tpu_custom_call.1} parent=1 // pred_check
      _
    $region15: #{tpu_custom_call.1} parent=1 // pred_check_branch
      %31 = sbr.rel (0) target = $region17
    $region16: #{tpu_custom_call.1} parent=1 // pred_region
      _
    $region17: #{tpu_custom_call.1} parent=1 // pred_fallthru
      _
    // Predicated region
    $region18: #{tpu_custom_call.1} parent=1 // pred_check
      _
    $region19: #{tpu_custom_call.1} parent=1 // pred_check_branch
      %33 = sbr.rel (0) target = $region21
    $region20: #{tpu_custom_call.1} parent=1 // pred_region
      _
    $region21: #{tpu_custom_call.1} parent=1 // pred_fallthru
      _
    // Predicated region
    $region22: #{tpu_custom_call.1} parent=1 // pred_check
      _
    $region23: #{tpu_custom_call.1} parent=1 // pred_check_branch
      %35 = sbr.rel (0) target = $region25
    $region24: #{tpu_custom_call.1} parent=1 // pred_region
      _
    $region25: #{tpu_custom_call.1} parent=1 // pred_fallthru
      _
    // Predicated region
    $region26: #{tpu_custom_call.1} parent=1 // pred_check
      _
    $region27: #{tpu_custom_call.1} parent=1 // pred_check_branch
      %37 = sbr.rel (0) target = $region29
    $region28: #{tpu_custom_call.1} parent=1 // pred_region
      _
    $region29: #{tpu_custom_call.1} parent=1 // pred_fallthru
      _
    // Predicated region
    $region30: #{tpu_custom_call.1} parent=1 // pred_check
      _
    $region31: #{tpu_custom_call.1} parent=1 // pred_check_branch
      %39 = sbr.rel (0) target = $region33
    $region32: #{tpu_custom_call.1} parent=1 // pred_region
      _
    $region33: #{tpu_custom_call.1} parent=1 // pred_fallthru
      _
    // Predicated region
    $region34: #{tpu_custom_call.1} parent=1 // pred_check
      _
    $region35: #{tpu_custom_call.1} parent=1 // pred_check_branch
      %41 = sbr.rel (0) target = $region37
    $region36: #{tpu_custom_call.1} parent=1 // pred_region
      _
    $region37: #{tpu_custom_call.1} parent=1 // pred_fallthru
      _
    // Predicated region
    $region38: #{tpu_custom_call.1} parent=1 // pred_check
      _
    $region39: #{tpu_custom_call.1} parent=1 // pred_check_branch
      %43 = sbr.rel (0) target = $region41
    $region40: #{tpu_custom_call.1} parent=1 // pred_region
      _
    $region41: #{tpu_custom_call.1} parent=1 // pred_fallthru
      _
    // Predicated region
    $region42: #{tpu_custom_call.1} parent=1 // pred_check
      _
    $region43: #{tpu_custom_call.1} parent=1 // pred_check_branch
      %45 = sbr.rel (0) target = $region45
    $region44: #{tpu_custom_call.1} parent=1 // pred_region
      _
    $region45: #{tpu_custom_call.1} parent=1 // pred_fallthru
      _
    // Predicated region
    $region46: #{tpu_custom_call.1} parent=1 // pred_check
      _
    $region47: #{tpu_custom_call.1} parent=1 // pred_check_branch
      %47 = sbr.rel (0) target = $region49
    $region48: #{tpu_custom_call.1} parent=1 // pred_region
      _
    $region49: #{tpu_custom_call.1} parent=1 // pred_fallthru
      _
    %v48 = vld [vmem:[%s0] sm:$0x3]
    %v49 = vld [vmem:[%s1] sm:$0xf]
    %vm50 = vcmask 31744
    %v52 = vsel %vm50, %v48, 0
    %vm54 = vcmask 1043456
    %v56 = vsel %vm54, %v49, 0
    %58 = vmatprep.subr.mxu0 0.0
    %59 = vmatpush1.msra.mxu0 %v56
    %60 = vmatprep.subr.mxu0 0.0
    %61 = vmatpush1.msra.mxu0 0.0
    %62 = vmatprep.subr.mxu0 0.0
    %63 = vmatpush1.msra.mxu0 0.0
    %64 = vmatprep.subr.mxu0 0.0
    %65 = vmatpush1.msra.mxu0 0.0
    %66 = vmatprep.subr.mxu0 0.0
    %67 = vmatpush1.msra.mxu0 0.0
    %68 = vmatprep.subr.mxu0 0.0
    %69 = vmatpush1.msra.mxu0 0.0
    %70 = vmatprep.subr.mxu0 0.0
    %71 = vmatpush1.msra.mxu0 0.0
    %72 = vmatprep.subr.mxu0 0.0
    %73 = vmatpush1.msra.mxu0 0.0
    %74 = vmatprep.subr.mxu0 0.0
    %75 = vmatpush1.msra.mxu0 0.0
    %76 = vmatprep.subr.mxu0 0.0
    %77 = vmatpush1.msra.mxu0 0.0
    %78 = vmatprep.subr.mxu0 0.0
    %79 = vmatpush1.msra.mxu0 0.0
    %80 = vmatprep.subr.mxu0 0.0
    %81 = vmatpush1.msra.mxu0 0.0
    %82 = vmatprep.subr.mxu0 0.0
    %83 = vmatpush1.msra.mxu0 0.0
    %84 = vmatprep.subr.mxu0 0.0
    %85 = vmatpush1.msra.mxu0 0.0
    %86 = vmatprep.subr.mxu0 0.0
    %87 = vmatpush1.msra.mxu0 0.0
    %88 = vmatprep.subr.mxu0 0.0
    %89 = vmatpush1.msra.mxu0 0.0
    %90 = vmatprep.subr.mxu0 0.0
    %91 = vmatpush1.msra.mxu0 0.0
    %92 = vmatprep.subr.mxu0 0.0
    %93 = vmatpush1.msra.mxu0 0.0
    %94 = vmatprep.subr.mxu0 0.0
    %95 = vmatpush1.msra.mxu0 0.0
    %96 = vmatprep.subr.mxu0 0.0
    %97 = vmatpush1.msra.mxu0 0.0
    %98 = vmatprep.subr.mxu0 0.0
    %99 = vmatpush1.msra.mxu0 0.0
    %100 = vmatprep.subr.mxu0 0.0
    %101 = vmatpush1.msra.mxu0 0.0
    %102 = vmatprep.subr.mxu0 0.0
    %103 = vmatpush1.msra.mxu0 0.0
    %104 = vmatprep.subr.mxu0 0.0
    %105 = vmatpush1.msra.mxu0 0.0
    %106 = vmatprep.subr.mxu0 0.0
    %107 = vmatpush1.msra.mxu0 0.0
    %108 = vmatprep.subr.mxu0 0.0
    %109 = vmatpush1.msra.mxu0 0.0
    %110 = vmatprep.subr.mxu0 0.0
    %111 = vmatpush1.msra.mxu0 0.0
    %112 = vmatprep.subr.mxu0 0.0
    %113 = vmatpush1.msra.mxu0 0.0
    %114 = vmatprep.subr.mxu0 0.0
    %115 = vmatpush1.msra.mxu0 0.0
    %116 = vmatprep.subr.mxu0 0.0
    %117 = vmatpush1.msra.mxu0 0.0
    %118 = vmatprep.subr.mxu0 0.0
    %119 = vmatpush1.msra.mxu0 0.0
    %120 = vmatprep.subr.mxu0 0.0
    %121 = vmatpush1.msra.mxu0 0.0
    %122 = vmatprep.mubr.f32.mxu0 0.0
    %123 = vmatmul.mubr.f32.gmra.mrb[0].mxu0 %v52
    %v124 = vpop.f32.mrb[0].mxu0
    %v125 = vadd.f32 0.0, %v124
    %v126 = vpop.f32.mrb[0].mxu0
    %127 = vdwg.mxu0
    %v128 = vld [vmem:[%s2] sm:$0x1]
    %v130 = vlaneseq
    %v131 = vshrl.u32 %v130, 7
    %v132 = vsub.s32 0, %v131
    %v133 = vrot.slane %v128, %v132
    %v135 = vmul.f32 %v125, %v133
    %v136 = vld [vmem:[%s3] sm:$0x1]
    %v138 = vlaneseq
    %v139 = vshrl.u32 %v138, 7
    %v140 = vsub.s32 0, %v139
    %v141 = vrot.slane %v136, %v140
    %v143 = vadd.f32 %v135, %v141
    %v144 = vmax.f32 %v143, 0.0
    %v145 = vld [vmem:[%s4] sm:$0xff]
    %v146 = vld [vmem:[%s4 + $0x8] sm:$0xff]
    %v147 = vld [vmem:[%s5] sm:$0x1]
    %v149 = vlaneseq
    %v150 = vshrl.u32 %v149, 7
    %v151 = vsub.s32 0, %v150
    %v152 = vrot.slane %v147, %v151
    %vm154 = vcmask 130048
    %v156 = vsel %vm154, %v144, 0
    %158 = vmatprep.subr.mxu0 0.0
    %159 = vmatpush1.msra.mxu0 %v145
    %160 = vmatprep.subr.mxu0 0.0
    %161 = vmatpush1.msra.mxu0 %v146
    %162 = vmatprep.subr.mxu0 0.0
    %163 = vmatpush1.msra.mxu0 0.0
    %164 = vmatprep.subr.mxu0 0.0
    %165 = vmatpush1.msra.mxu0 0.0
    %166 = vmatprep.subr.mxu0 0.0
    %167 = vmatpush1.msra.mxu0 0.0
    %168 = vmatprep.subr.mxu0 0.0
    %169 = vmatpush1.msra.mxu0 0.0
    %170 = vmatprep.subr.mxu0 0.0
    %171 = vmatpush1.msra.mxu0 0.0
    %172 = vmatprep.subr.mxu0 0.0
    %173 = vmatpush1.msra.mxu0 0.0
    %174 = vmatprep.subr.mxu0 0.0
    %175 = vmatpush1.msra.mxu0 0.0
    %176 = vmatprep.subr.mxu0 0.0
    %177 = vmatpush1.msra.mxu0 0.0
    %178 = vmatprep.subr.mxu0 0.0
    %179 = vmatpush1.msra.mxu0 0.0
    %180 = vmatprep.subr.mxu0 0.0
    %181 = vmatpush1.msra.mxu0 0.0
    %182 = vmatprep.subr.mxu0 0.0
    %183 = vmatpush1.msra.mxu0 0.0
    %184 = vmatprep.subr.mxu0 0.0
    %185 = vmatpush1.msra.mxu0 0.0
    %186 = vmatprep.subr.mxu0 0.0
    %187 = vmatpush1.msra.mxu0 0.0
    %188 = vmatprep.subr.mxu0 0.0
    %189 = vmatpush1.msra.mxu0 0.0
    %190 = vmatprep.subr.mxu0 0.0
    %191 = vmatpush1.msra.mxu0 0.0
    %192 = vmatprep.subr.mxu0 0.0
    %193 = vmatpush1.msra.mxu0 0.0
    %194 = vmatprep.subr.mxu0 0.0
    %195 = vmatpush1.msra.mxu0 0.0
    %196 = vmatprep.subr.mxu0 0.0
    %197 = vmatpush1.msra.mxu0 0.0
    %198 = vmatprep.subr.mxu0 0.0
    %199 = vmatpush1.msra.mxu0 0.0
    %200 = vmatprep.subr.mxu0 0.0
    %201 = vmatpush1.msra.mxu0 0.0
    %202 = vmatprep.subr.mxu0 0.0
    %203 = vmatpush1.msra.mxu0 0.0
    %204 = vmatprep.subr.mxu0 0.0
    %205 = vmatpush1.msra.mxu0 0.0
    %206 = vmatprep.subr.mxu0 0.0
    %207 = vmatpush1.msra.mxu0 0.0
    %208 = vmatprep.subr.mxu0 0.0
    %209 = vmatpush1.msra.mxu0 0.0
    %210 = vmatprep.subr.mxu0 0.0
    %211 = vmatpush1.msra.mxu0 0.0
    %212 = vmatprep.subr.mxu0 0.0
    %213 = vmatpush1.msra.mxu0 0.0
    %214 = vmatprep.subr.mxu0 0.0
    %215 = vmatpush1.msra.mxu0 0.0
    %216 = vmatprep.subr.mxu0 0.0
    %217 = vmatpush1.msra.mxu0 0.0
    %218 = vmatprep.subr.mxu0 0.0
    %219 = vmatpush1.msra.mxu0 0.0
    %220 = vmatprep.subr.mxu0 0.0
    %221 = vmatpush1.msra.mxu0 0.0
    %222 = vmatprep.mubr.f32.mxu0 0.0
    %223 = vmatmul.mubr.f32.gmra.mrb[0].mxu0 %v156
    %v224 = vpop.f32.mrb[0].mxu0
    %v225 = vadd.f32 %v152, %v224
    %v226 = vpop.f32.mrb[0].mxu0
    %227 = vdwg.mxu0
    %v228 = vsub.f32 0.0, %v225
    %v229 = vmul.f32 %v228, 1.442695
    %v230 = vpow.pop %v229
    %v231 = vadd.f32 %v230, 1.0
    %v232 = vrcp.pop %v231
    %v233 = vmul.f32 1.0, %v232
    %v234 = vld [vmem:[%s6] sm:$0xff]
    %v235 = vld [vmem:[%s6 + $0x8] sm:$0xff]
    %v236 = vld [vmem:[%s7] sm:$0x1]
    %v238 = vlaneseq
    %v239 = vshrl.u32 %v238, 7
    %v240 = vsub.s32 0, %v239
    %v241 = vrot.slane %v236, %v240
    %243 = vmatprep.subr.mxu0 0.0
    %244 = vmatpush1.msra.mxu0 %v234
    %245 = vmatprep.subr.mxu0 0.0
    %246 = vmatpush1.msra.mxu0 %v235
    %247 = vmatprep.subr.mxu0 0.0
    %248 = vmatpush1.msra.mxu0 0.0
    %249 = vmatprep.subr.mxu0 0.0
    %250 = vmatpush1.msra.mxu0 0.0
    %251 = vmatprep.subr.mxu0 0.0
    %252 = vmatpush1.msra.mxu0 0.0
    %253 = vmatprep.subr.mxu0 0.0
    %254 = vmatpush1.msra.mxu0 0.0
    %255 = vmatprep.subr.mxu0 0.0
    %256 = vmatpush1.msra.mxu0 0.0
    %257 = vmatprep.subr.mxu0 0.0
    %258 = vmatpush1.msra.mxu0 0.0
    %259 = vmatprep.subr.mxu0 0.0
    %260 = vmatpush1.msra.mxu0 0.0
    %261 = vmatprep.subr.mxu0 0.0
    %262 = vmatpush1.msra.mxu0 0.0
    %263 = vmatprep.subr.mxu0 0.0
    %264 = vmatpush1.msra.mxu0 0.0
    %265 = vmatprep.subr.mxu0 0.0
    %266 = vmatpush1.msra.mxu0 0.0
    %267 = vmatprep.subr.mxu0 0.0
    %268 = vmatpush1.msra.mxu0 0.0
    %269 = vmatprep.subr.mxu0 0.0
    %270 = vmatpush1.msra.mxu0 0.0
    %271 = vmatprep.subr.mxu0 0.0
    %272 = vmatpush1.msra.mxu0 0.0
    %273 = vmatprep.subr.mxu0 0.0
    %274 = vmatpush1.msra.mxu0 0.0
    %275 = vmatprep.subr.mxu0 0.0
    %276 = vmatpush1.msra.mxu0 0.0
    %277 = vmatprep.subr.mxu0 0.0
    %278 = vmatpush1.msra.mxu0 0.0
    %279 = vmatprep.subr.mxu0 0.0
    %280 = vmatpush1.msra.mxu0 0.0
    %281 = vmatprep.subr.mxu0 0.0
    %282 = vmatpush1.msra.mxu0 0.0
    %283 = vmatprep.subr.mxu0 0.0
    %284 = vmatpush1.msra.mxu0 0.0
    %285 = vmatprep.subr.mxu0 0.0
    %286 = vmatpush1.msra.mxu0 0.0
    %287 = vmatprep.subr.mxu0 0.0
    %288 = vmatpush1.msra.mxu0 0.0
    %289 = vmatprep.subr.mxu0 0.0
    %290 = vmatpush1.msra.mxu0 0.0
    %291 = vmatprep.subr.mxu0 0.0
    %292 = vmatpush1.msra.mxu0 0.0
    %293 = vmatprep.subr.mxu0 0.0
    %294 = vmatpush1.msra.mxu0 0.0
    %295 = vmatprep.subr.mxu0 0.0
    %296 = vmatpush1.msra.mxu0 0.0
    %297 = vmatprep.subr.mxu0 0.0
    %298 = vmatpush1.msra.mxu0 0.0
    %299 = vmatprep.subr.mxu0 0.0
    %300 = vmatpush1.msra.mxu0 0.0
    %301 = vmatprep.subr.mxu0 0.0
    %302 = vmatpush1.msra.mxu0 0.0
    %303 = vmatprep.subr.mxu0 0.0
    %304 = vmatpush1.msra.mxu0 0.0
    %305 = vmatprep.subr.mxu0 0.0
    %306 = vmatpush1.msra.mxu0 0.0
    %307 = vmatprep.mubr.f32.mxu0 0.0
    %308 = vmatmul.mubr.f32.gmra.mrb[0].mxu0 %v156
    %v309 = vpop.f32.mrb[0].mxu0
    %v310 = vadd.f32 %v241, %v309
    %v311 = vpop.f32.mrb[0].mxu0
    %312 = vdwg.mxu0
    %v313 = vsub.f32 0.0, %v310
    %v314 = vmul.f32 %v313, 1.442695
    %v315 = vpow.pop %v314
    %v316 = vadd.f32 %v315, 1.0
    %v317 = vrcp.pop %v316
    %v318 = vmul.f32 1.0, %v317
    %v319 = vld [vmem:[%s8] sm:$0xff]
    %v320 = vld [vmem:[%s8 + $0x8] sm:$0xff]
    %v321 = vld [vmem:[%s9] sm:$0x1]
    %v323 = vlaneseq
    %v324 = vshrl.u32 %v323, 7
    %v325 = vsub.s32 0, %v324
    %v326 = vrot.slane %v321, %v325
    %328 = vmatprep.subr.mxu0 0.0
    %329 = vmatpush1.msra.mxu0 %v319
    %330 = vmatprep.subr.mxu0 0.0
    %331 = vmatpush1.msra.mxu0 %v320
    %332 = vmatprep.subr.mxu0 0.0
    %333 = vmatpush1.msra.mxu0 0.0
    %334 = vmatprep.subr.mxu0 0.0
    %335 = vmatpush1.msra.mxu0 0.0
    %336 = vmatprep.subr.mxu0 0.0
    %337 = vmatpush1.msra.mxu0 0.0
    %338 = vmatprep.subr.mxu0 0.0
    %339 = vmatpush1.msra.mxu0 0.0
    %340 = vmatprep.subr.mxu0 0.0
    %341 = vmatpush1.msra.mxu0 0.0
    %342 = vmatprep.subr.mxu0 0.0
    %343 = vmatpush1.msra.mxu0 0.0
    %344 = vmatprep.subr.mxu0 0.0
    %345 = vmatpush1.msra.mxu0 0.0
    %346 = vmatprep.subr.mxu0 0.0
    %347 = vmatpush1.msra.mxu0 0.0
    %348 = vmatprep.subr.mxu0 0.0
    %349 = vmatpush1.msra.mxu0 0.0
    %350 = vmatprep.subr.mxu0 0.0
    %351 = vmatpush1.msra.mxu0 0.0
    %352 = vmatprep.subr.mxu0 0.0
    %353 = vmatpush1.msra.mxu0 0.0
    %354 = vmatprep.subr.mxu0 0.0
    %355 = vmatpush1.msra.mxu0 0.0
    %356 = vmatprep.subr.mxu0 0.0
    %357 = vmatpush1.msra.mxu0 0.0
    %358 = vmatprep.subr.mxu0 0.0
    %359 = vmatpush1.msra.mxu0 0.0
    %360 = vmatprep.subr.mxu0 0.0
    %361 = vmatpush1.msra.mxu0 0.0
    %362 = vmatprep.subr.mxu0 0.0
    %363 = vmatpush1.msra.mxu0 0.0
    %364 = vmatprep.subr.mxu0 0.0
    %365 = vmatpush1.msra.mxu0 0.0
    %366 = vmatprep.subr.mxu0 0.0
    %367 = vmatpush1.msra.mxu0 0.0
    %368 = vmatprep.subr.mxu0 0.0
    %369 = vmatpush1.msra.mxu0 0.0
    %370 = vmatprep.subr.mxu0 0.0
    %371 = vmatpush1.msra.mxu0 0.0
    %372 = vmatprep.subr.mxu0 0.0
    %373 = vmatpush1.msra.mxu0 0.0
    %374 = vmatprep.subr.mxu0 0.0
    %375 = vmatpush1.msra.mxu0 0.0
    %376 = vmatprep.subr.mxu0 0.0
    %377 = vmatpush1.msra.mxu0 0.0
    %378 = vmatprep.subr.mxu0 0.0
    %379 = vmatpush1.msra.mxu0 0.0
    %380 = vmatprep.subr.mxu0 0.0
    %381 = vmatpush1.msra.mxu0 0.0
    %382 = vmatprep.subr.mxu0 0.0
    %383 = vmatpush1.msra.mxu0 0.0
    %384 = vmatprep.subr.mxu0 0.0
    %385 = vmatpush1.msra.mxu0 0.0
    %386 = vmatprep.subr.mxu0 0.0
    %387 = vmatpush1.msra.mxu0 0.0
    %388 = vmatprep.subr.mxu0 0.0
    %389 = vmatpush1.msra.mxu0 0.0
    %390 = vmatprep.subr.mxu0 0.0
    %391 = vmatpush1.msra.mxu0 0.0
    %392 = vmatprep.mubr.f32.mxu0 0.0
    %393 = vmatmul.mubr.f32.gmra.mrb[0].mxu0 %v156
    %v394 = vpop.f32.mrb[0].mxu0
    %v395 = vadd.f32 %v326, %v394
    %v396 = vpop.f32.mrb[0].mxu0
    %397 = vdwg.mxu0
    %v398 = vsub.f32 0.0, %v395
    %v399 = vmul.f32 %v398, 1.442695
    %v400 = vpow.pop %v399
    %v401 = vadd.f32 %v400, 1.0
    %v402 = vrcp.pop %v401
    %v403 = vmul.f32 1.0, %v402
    %v404 = vld [vmem:[%s10] sm:$0xff]
    %v405 = vld [vmem:[%s10 + $0x8] sm:$0xff]
    %v406 = vld [vmem:[%s11] sm:$0x1]
    %v408 = vlaneseq
    %v409 = vshrl.u32 %v408, 7
    %v410 = vsub.s32 0, %v409
    %v411 = vrot.slane %v406, %v410
    %413 = vmatprep.subr.mxu0 0.0
    %414 = vmatpush1.msra.mxu0 %v404
    %415 = vmatprep.subr.mxu0 0.0
    %416 = vmatpush1.msra.mxu0 %v405
    %417 = vmatprep.subr.mxu0 0.0
    %418 = vmatpush1.msra.mxu0 0.0
    %419 = vmatprep.subr.mxu0 0.0
    %420 = vmatpush1.msra.mxu0 0.0
    %421 = vmatprep.subr.mxu0 0.0
    %422 = vmatpush1.msra.mxu0 0.0
    %423 = vmatprep.subr.mxu0 0.0
    %424 = vmatpush1.msra.mxu0 0.0
    %425 = vmatprep.subr.mxu0 0.0
    %426 = vmatpush1.msra.mxu0 0.0
    %427 = vmatprep.subr.mxu0 0.0
    %428 = vmatpush1.msra.mxu0 0.0
    %429 = vmatprep.subr.mxu0 0.0
    %430 = vmatpush1.msra.mxu0 0.0
    %431 = vmatprep.subr.mxu0 0.0
    %432 = vmatpush1.msra.mxu0 0.0
    %433 = vmatprep.subr.mxu0 0.0
    %434 = vmatpush1.msra.mxu0 0.0
    %435 = vmatprep.subr.mxu0 0.0
    %436 = vmatpush1.msra.mxu0 0.0
    %437 = vmatprep.subr.mxu0 0.0
    %438 = vmatpush1.msra.mxu0 0.0
    %439 = vmatprep.subr.mxu0 0.0
    %440 = vmatpush1.msra.mxu0 0.0
    %441 = vmatprep.subr.mxu0 0.0
    %442 = vmatpush1.msra.mxu0 0.0
    %443 = vmatprep.subr.mxu0 0.0
    %444 = vmatpush1.msra.mxu0 0.0
    %445 = vmatprep.subr.mxu0 0.0
    %446 = vmatpush1.msra.mxu0 0.0
    %447 = vmatprep.subr.mxu0 0.0
    %448 = vmatpush1.msra.mxu0 0.0
    %449 = vmatprep.subr.mxu0 0.0
    %450 = vmatpush1.msra.mxu0 0.0
    %451 = vmatprep.subr.mxu0 0.0
    %452 = vmatpush1.msra.mxu0 0.0
    %453 = vmatprep.subr.mxu0 0.0
    %454 = vmatpush1.msra.mxu0 0.0
    %455 = vmatprep.subr.mxu0 0.0
    %456 = vmatpush1.msra.mxu0 0.0
    %457 = vmatprep.subr.mxu0 0.0
    %458 = vmatpush1.msra.mxu0 0.0
    %459 = vmatprep.subr.mxu0 0.0
    %460 = vmatpush1.msra.mxu0 0.0
    %461 = vmatprep.subr.mxu0 0.0
    %462 = vmatpush1.msra.mxu0 0.0
    %463 = vmatprep.subr.mxu0 0.0
    %464 = vmatpush1.msra.mxu0 0.0
    %465 = vmatprep.subr.mxu0 0.0
    %466 = vmatpush1.msra.mxu0 0.0
    %467 = vmatprep.subr.mxu0 0.0
    %468 = vmatpush1.msra.mxu0 0.0
    %469 = vmatprep.subr.mxu0 0.0
    %470 = vmatpush1.msra.mxu0 0.0
    %471 = vmatprep.subr.mxu0 0.0
    %472 = vmatpush1.msra.mxu0 0.0
    %473 = vmatprep.subr.mxu0 0.0
    %474 = vmatpush1.msra.mxu0 0.0
    %475 = vmatprep.subr.mxu0 0.0
    %476 = vmatpush1.msra.mxu0 0.0
    %477 = vmatprep.mubr.f32.mxu0 0.0
    %478 = vmatmul.mubr.f32.gmra.mrb[0].mxu0 %v156
    %v479 = vpop.f32.mrb[0].mxu0
    %v480 = vadd.f32 %v411, %v479
    %v481 = vpop.f32.mrb[0].mxu0
    %482 = vdwg.mxu0
    %vm483 = vcmask 25600
    %v484 = vsel %vm483, %v480, -inf
    %485 = vmax.xlane.f32.xlu0 %v484
    %v486 = vpop.xlane.xlu0 %485
    %v487 = vsub.f32 %v480, %v486
    %v488 = vmul.f32 %v487, 1.442695
    %v489 = vpow.pop %v488
    %v490 = vsel %vm483, %v489, 0.0
    %491 = vadd.xlane.f32.xlu0 %v490
    %v492 = vpop.xlane.xlu0 %491
    %v493 = vrcp.pop %v492
    %v494 = vmul.f32 %v489, %v493
    %495 = vst.msk [vmem:[#allocation2] sm:$0x3] %vm483, %v233
    %vm496 = vcmask 58368
    %497 = vst.msk [vmem:[#allocation4] sm:$0x3] %vm496, %v318
    %vm498 = vcmask 214016
    %499 = vst.msk [vmem:[#allocation6] sm:$0x3] %vm498, %v403
    %500 = vst.msk [vmem:[#allocation7] sm:$0x3] %vm483, %v494
    // Predicated region
    $region50: #{tpu_custom_call.1} parent=1 // pred_check
      _
    $region51: #{tpu_custom_call.1} parent=1 // pred_check_branch
      %502 = sbr.rel (0) target = $region53
    $region52: #{tpu_custom_call.1} parent=1 // pred_region
      %s504 = ssub.s32 32, 32
      %505 = vsyncadd [#allocation3], %s504
      %s507 = sshll.u32 [#allocation2], 4
      %s508 = int_to_ptr.vmem [resolvable:$true] %s507
      %510 = dma.vmem_to_hbm [thread:$0]  %s508, 32, %s12, [#allocation3]
    $region53: #{tpu_custom_call.1} parent=1 // pred_fallthru
      _
    // Predicated region
    $region54: #{tpu_custom_call.1} parent=1 // pred_check
      _
    $region55: #{tpu_custom_call.1} parent=1 // pred_check_branch
      %512 = sbr.rel (0) target = $region57
    $region56: #{tpu_custom_call.1} parent=1 // pred_region
      %s514 = ssub.s32 32, 32
      %515 = vsyncadd [#allocation5], %s514
      %s517 = sshll.u32 [#allocation4], 4
      %s518 = int_to_ptr.vmem [resolvable:$true] %s517
      %520 = dma.vmem_to_hbm [thread:$0]  %s518, 32, %s13, [#allocation5]
    $region57: #{tpu_custom_call.1} parent=1 // pred_fallthru
      _
    // Predicated region
    $region58: #{tpu_custom_call.1} parent=1 // pred_check
      _
    $region59: #{tpu_custom_call.1} parent=1 // pred_check_branch
      %522 = sbr.rel (0) target = $region61
    $region60: #{tpu_custom_call.1} parent=1 // pred_region
      %s524 = ssub.s32 32, 32
      %525 = vsyncadd [#allocation5], %s524
      %s527 = sshll.u32 [#allocation6], 4
      %s528 = int_to_ptr.vmem [resolvable:$true] %s527
      %530 = dma.vmem_to_hbm [thread:$0]  %s528, 32, %s14, [#allocation5]
    $region61: #{tpu_custom_call.1} parent=1 // pred_fallthru
      _
    // Predicated region
    $region62: #{tpu_custom_call.1} parent=1 // pred_check
      _
    $region63: #{tpu_custom_call.1} parent=1 // pred_check_branch
      %532 = sbr.rel (0) target = $region65
    $region64: #{tpu_custom_call.1} parent=1 // pred_region
      %s534 = ssub.s32 32, 32
      %535 = vsyncadd [#allocation8], %s534
      %s537 = sshll.u32 [#allocation7], 4
      %s538 = int_to_ptr.vmem [resolvable:$true] %s537
      %540 = dma.vmem_to_hbm [thread:$0]  %s538, 32, %s15, [#allocation8]
    $region65: #{tpu_custom_call.1} parent=1 // pred_fallthru
      _
    // Predicated region
    $region66: #{tpu_custom_call.1} parent=1 // pred_check
      _
    $region67: #{tpu_custom_call.1} parent=1 // pred_check_branch
      %542 = sbr.rel (0) target = $region69
    $region68: #{tpu_custom_call.1} parent=1 // pred_region
      %543 = dma.done [#allocation3], 32
    $region69: #{tpu_custom_call.1} parent=1 // pred_fallthru
      _
    // Predicated region
    $region70: #{tpu_custom_call.1} parent=1 // pred_check
      _
    $region71: #{tpu_custom_call.1} parent=1 // pred_check_branch
      %545 = sbr.rel (0) target = $region73
    $region72: #{tpu_custom_call.1} parent=1 // pred_region
      %546 = dma.done [#allocation5], 32
    $region73: #{tpu_custom_call.1} parent=1 // pred_fallthru
      _
    // Predicated region
    $region74: #{tpu_custom_call.1} parent=1 // pred_check
      _
    $region75: #{tpu_custom_call.1} parent=1 // pred_check_branch
      %548 = sbr.rel (0) target = $region77
    $region76: #{tpu_custom_call.1} parent=1 // pred_region
      %549 = dma.done [#allocation5], 32
    $region77: #{tpu_custom_call.1} parent=1 // pred_fallthru
      _
    // Predicated region
    $region78: #{tpu_custom_call.1} parent=1 // pred_check
      _
    $region79: #{tpu_custom_call.1} parent=1 // pred_check_branch
      %551 = sbr.rel (0) target = $region81
    $region80: #{tpu_custom_call.1} parent=1 // pred_region
      %552 = dma.done [#allocation8], 32
    $region81: #{tpu_custom_call.1} parent=1 // pred_fallthru
      _
    %553 = vsyncpa [#allocation3], 1
    %554 = vsyncpa [#allocation5], 1
    %555 = vsyncpa [#allocation8], 1

</llo_original>
